<compile_context>
chip_gen: v7x
topology: tpu7x:2x2x1
jax: 0.10.0
libtpu: 0.0.40
codegen_flags: <defaults>
</compile_context>

<pallas_src>
import jax
import jax.numpy as jnp
from jax.experimental import pallas as pl
from jax.experimental.pallas import tpu as pltpu

_LANE = 128
_TARGET_BLOCK_BYTES = 2 * 1024 * 1024   # ~2 MiB per block (x4 resident w/ dbl-buffered in+out)
_VMEM_LIMIT_BYTES = 32 * 1024 * 1024    # explicit scoped-VMEM headroom; safe on v5e/v6e/v7x


def _flatten_copy_kernel(x_ref, o_ref):
    # Pure data movement: stream lane-dense tiles through VMEM.
    o_ref[...] = x_ref[...]


def _pallas_copy_2d(x2d: jax.Array, block_r: int, block_c: int) -> jax.Array:
    """Tiled identity copy of a 2-D array; output aliases the input buffer."""
    rows, cols = x2d.shape
    grid = (pl.cdiv(rows, block_r), pl.cdiv(cols, block_c))
    return pl.pallas_call(
        _flatten_copy_kernel,
        out_shape=jax.ShapeDtypeStruct((rows, cols), x2d.dtype),
        grid_spec=pltpu.PrefetchScalarGridSpec(
            num_scalar_prefetch=0,
            grid=grid,
            in_specs=[pl.BlockSpec((block_r, block_c), lambda i, j: (i, j))],
            out_specs=pl.BlockSpec((block_r, block_c), lambda i, j: (i, j)),
        ),
        compiler_params=pltpu.CompilerParams(
            dimension_semantics=("parallel", "parallel"),
            vmem_limit_bytes=_VMEM_LIMIT_BYTES,
        ),
        # Reuse the (already materialized) flattened input buffer for the
        # output; avoids allocating a second (B, size)-sized HBM array when
        # the input is donatable.
        input_output_aliases={0: 0},
    )(x2d)


def flatten_forward(x: jax.Array, size: int) -> jax.Array:
    """Equivalent of Flatten(size).forward(x) for x of shape (B, ...)."""
    B = x.shape[0]
    total = 1
    for d in x.shape[1:]:
        total *= d
    assert total == size, f"size mismatch: got {total} elements, expected {size}"

    n = B * size
    itemsize = jnp.dtype(x.dtype).itemsize
    # Sublane packing for the second-to-last dim: 8 (32-bit), 16 (16-bit), 32 (8-bit).
    sub = max(1, 32 // itemsize)

    if n % _LANE == 0:
        # Lane-dense path: view the whole contiguous buffer as (rows, cols)
        # with a wide, 128-aligned last dim. Row-major reshape is free and
        # preserves element order exactly (same as torch .view()).
        cols = _LANE
        while cols * 2 <= 4096 and n % (cols * 2) == 0:
            cols *= 2
        rows = n // cols

        # Row-tile sized by VMEM budget; partial last block handled by Pallas.
        tile_r = max(1, _TARGET_BLOCK_BYTES // (cols * itemsize))
        if tile_r >= rows:
            tile_r = rows                               # full extent (always legal)
        else:
            tile_r = max(sub, (tile_r // sub) * sub)    # keep sublane-aligned

        x2d = jnp.reshape(x, (rows, cols))              # metadata-only collapse
        out2d = _pallas_copy_2d(x2d, tile_r, cols)
        return jnp.reshape(out2d, (B, size))            # metadata-only

    # Fallback (flattened length not 128-divisible, uncommon): cdiv-tile along
    # the feature dim with a VMEM-budgeted, 128-aligned tile. No single
    # full-extent block, so no VMEM blow-up for large tensors.
    x2d = jnp.reshape(x, (B, size))
    tile_n = max(1, _TARGET_BLOCK_BYTES // (B * itemsize))
    if tile_n >= size:
        tile_n = size                                   # full extent (always legal)
    else:
        tile_n = max(_LANE, (tile_n // _LANE) * _LANE)
    return _pallas_copy_2d(x2d, B, tile_n)


if __name__ == "__main__":
    # Small shapes consistent with a DCGAN feature map: (B, C, H, W).
    B, C, H, W = 2, 4, 16, 16
    size = C * H * W  # 1024

    key = jax.random.PRNGKey(0)
    x = jax.random.normal(key, (B, C, H, W), dtype=jnp.float32)

    # Pure-JAX reference of torch's .view(B, size), computed up front.
    ref = jnp.reshape(x, (B, size))

    flatten = jax.jit(lambda inp: flatten_forward(inp, size))
    y = jax.block_until_ready(flatten(x))

    assert y.shape == (B, size)
    assert y.dtype == x.dtype
    assert jnp.array_equal(y, ref)

    print("KERNEL_OK")
</pallas_src>

<mosaic_0001>
module attributes {stable_mosaic.version = 11 : i64} {
  func.func @_flatten_copy_kernel(%arg0: i32, %arg1: i32, %arg2: memref<1x2048xf32, #tpu.memory_space<vmem>>, %arg3: memref<1x2048xf32, #tpu.memory_space<vmem>>) attributes {dimension_semantics = [#tpu.dimension_semantics<parallel>, #tpu.dimension_semantics<parallel>], iteration_bounds = array<i64: 1, 1>, scalar_prefetch = 0 : i64, scratch_operands = 0 : i64, tpu.core_type = #tpu.core_type<tc>, window_params = [{transform_indices = @transform_0, window_bounds = array<i64: 1, 2048>}, {transform_indices = @transform_1, window_bounds = array<i64: 1, 2048>}]} {
    %c0 = arith.constant 0 : index
    %c0_0 = arith.constant 0 : index
    %0 = vector.load %arg2[%c0, %c0_0] : memref<1x2048xf32, #tpu.memory_space<vmem>>, vector<1x2048xf32>
    %c0_1 = arith.constant 0 : index
    %c0_2 = arith.constant 0 : index
    %1 = vector.load %arg3[%c0_1, %c0_2] : memref<1x2048xf32, #tpu.memory_space<vmem>>, vector<1x2048xf32>
    tpu.vector_store %arg3[%c0_1, %c0_2], %0 {strides = array<i32>} : memref<1x2048xf32, #tpu.memory_space<vmem>>, vector<1x2048xf32>,
    return
  }
  func.func @transform_0(%arg0: i32, %arg1: i32) -> (i32, i32) {
    %c0_i32 = arith.constant 0 : i32
    return %arg0, %arg1 : i32, i32
  }
  func.func @transform_1(%arg0: i32, %arg1: i32) -> (i32, i32) {
    %c0_i32 = arith.constant 0 : i32
    return %arg0, %arg1 : i32, i32
  }
}

</mosaic_0001>

<llo_original>
// kernel: _lambda_.1
$region0: #{_lambda_.1}
  #allocation0 [shape = 'u32[]', space=smem, size = 0x4, offset = 0x4, fixed_abs, tag = 'smem constant byte address 0x4 - core index']
  #allocation1 [shape = 'u32[144,128]{1,0:T(1,128)}', space=vmem, size = 0x12000, scoped, tag = 'internal scratch']
  %s0 = inlined_call_operand.vmem [shape: f32[1,2048], index: 0, kind: input, shape index: {}, may-alias: {0,1}]
  %s1 = inlined_call_operand.vmem [shape: f32[1,2048], index: 1, kind: output, shape index: {}, may-alias: {0,1}]
  %s2 = sld [smem:[#allocation0]]
  $region14: #{_lambda_.1} parent=0
    _
  %s4 = ssub.s32 1, %s2
  %s5 = scalar_select 0, %s4, %s2
  // Predicated region
  $region2: #{_lambda_.1} parent=0 // pred_check
    _
  $region3: #{_lambda_.1} parent=0 // pred_check_branch
    %7 = sbr.rel (0) target = $region5
  $region4: #{_lambda_.1} parent=0 // pred_region
    _
  $region5: #{_lambda_.1} parent=0 // pred_fallthru
    _
  %v8 = vld [vmem:[%s0] sm:$0xff]
  %v9 = vld [vmem:[%s0 + $0x8] sm:$0xff]
  %10 = vst [vmem:[%s1] sm:$0xff] %v8
  %11 = vst [vmem:[%s1 + $0x8] sm:$0xff] %v9
  // Predicated region
  $region6: #{_lambda_.1} parent=0 // pred_check
    _
  $region7: #{_lambda_.1} parent=0 // pred_check_branch
    %13 = sbr.rel (0) target = $region9
  $region8: #{_lambda_.1} parent=0 // pred_region
    _
  $region9: #{_lambda_.1} parent=0 // pred_fallthru
    _
  // Predicated region
  $region10: #{_lambda_.1} parent=0 // pred_check
    _
  $region11: #{_lambda_.1} parent=0 // pred_check_branch
    %15 = sbr.rel (0) target = $region13
  $region12: #{_lambda_.1} parent=0 // pred_region
    _
  $region13: #{_lambda_.1} parent=0 // pred_fallthru
    _

</llo_original>
